<compile_context>
chip_gen: v7x
topology: tpu7x:2x2x1
jax: 0.10.0
libtpu: 0.0.40
codegen_flags: <defaults>
</compile_context>

<pallas_src>
import numpy as np
import jax
import jax.numpy as jnp
from jax.experimental import pallas as pl
from jax.experimental.pallas import tpu as pltpu


def _clone_and_set_kernel(x_ref, o_ref):
    # The clone: one vld + one vst of the whole (tiny) tile.
    o_ref[...] = x_ref[...]

    # Point-update o[1, 1, 0] = 2.0, touching only the (2, 2) plane at
    # first-axis index 1.  The mask lives purely on the (sublane, lane) dims,
    # where 2-D iota is natively supported.
    plane = x_ref[1]                                              # (2, 2)
    j = jax.lax.broadcasted_iota(jnp.int32, plane.shape, 0)       # sublane idx
    k = jax.lax.broadcasted_iota(jnp.int32, plane.shape, 1)       # lane idx
    o_ref[1] = jnp.where((j == 1) & (k == 0),
                         jnp.asarray(2.0, plane.dtype),
                         plane)


def clone_and_set(x):
    """Pallas equivalent of: y = x.clone(); y[1, 1, 0] = 2.0; return y."""
    return pl.pallas_call(
        _clone_and_set_kernel,
        out_shape=jax.ShapeDtypeStruct(x.shape, x.dtype),
        in_specs=[pl.BlockSpec(memory_space=pltpu.MemorySpace.VMEM)],
        out_specs=pl.BlockSpec(memory_space=pltpu.MemorySpace.VMEM),
    )(x)


if __name__ == "__main__":
    key = jax.random.PRNGKey(0)
    # Same shape as the PyTorch reference: torch.randn(2, 2, 2)
    x = jax.random.normal(key, (2, 2, 2), dtype=jnp.float32)
    x_host = np.array(x)  # host copy to genuinely verify clone semantics

    y = jax.block_until_ready(clone_and_set(x))

    # Reference check in plain JAX.
    y_ref = x.at[1, 1, 0].set(2.0)
    assert jnp.allclose(y, y_ref), "mismatch vs reference"
    assert float(y[1, 1, 0]) == 2.0, "target element not set"
    # Input must be untouched (clone semantics) — compare against saved copy.
    assert np.allclose(np.array(x), x_host), "input buffer was mutated"

    print("KERNEL_OK")
</pallas_src>

<mosaic_0001>
module attributes {stable_mosaic.version = 11 : i64} {
  func.func @_clone_and_set_kernel(%arg0: memref<2x2x2xf32, #tpu.memory_space<vmem>>, %arg1: memref<2x2x2xf32, #tpu.memory_space<vmem>>) attributes {dimension_semantics = [], scalar_prefetch = 0 : i64, scratch_operands = 0 : i64, tpu.core_type = #tpu.core_type<tc>} {
    %c0 = arith.constant 0 : index
    %c0_0 = arith.constant 0 : index
    %c0_1 = arith.constant 0 : index
    %0 = vector.load %arg0[%c0, %c0_0, %c0_1] : memref<2x2x2xf32, #tpu.memory_space<vmem>>, vector<2x2x2xf32>
    %c0_2 = arith.constant 0 : index
    %c0_3 = arith.constant 0 : index
    %c0_4 = arith.constant 0 : index
    %1 = vector.load %arg1[%c0_2, %c0_3, %c0_4] : memref<2x2x2xf32, #tpu.memory_space<vmem>>, vector<2x2x2xf32>
    tpu.vector_store %arg1[%c0_2, %c0_3, %c0_4], %0 {strides = array<i32>} : memref<2x2x2xf32, #tpu.memory_space<vmem>>, vector<2x2x2xf32>,
    %c1 = arith.constant 1 : index
    %c0_5 = arith.constant 0 : index
    %c0_6 = arith.constant 0 : index
    %2 = vector.load %arg0[%c1, %c0_5, %c0_6] : memref<2x2x2xf32, #tpu.memory_space<vmem>>, vector<1x2x2xf32>
    %3 = vector.shape_cast %2 : vector<1x2x2xf32> to vector<2x2xf32>
    %4 = tpu.iota {dimensions = array<i32: 0>} : vector<2x2xi32>
    %5 = tpu.iota {dimensions = array<i32: 1>} : vector<2x2xi32>
    %c1_i32 = arith.constant 1 : i32
    %6 = vector.broadcast %c1_i32 : i32 to vector<2x2xi32>
    %7 = arith.cmpi eq, %4, %6 : vector<2x2xi32>
    %c0_i32 = arith.constant 0 : i32
    %8 = vector.broadcast %c0_i32 : i32 to vector<2x2xi32>
    %9 = arith.cmpi eq, %5, %8 : vector<2x2xi32>
    %10 = arith.andi %7, %9 : vector<2x2xi1>
    %cst = arith.constant 2.000000e+00 : f32
    %11 = vector.broadcast %cst : f32 to vector<2x2xf32>
    %12 = arith.select %10, %11, %3 : vector<2x2xi1>, vector<2x2xf32>
    %c1_7 = arith.constant 1 : index
    %c0_8 = arith.constant 0 : index
    %c0_9 = arith.constant 0 : index
    %13 = vector.load %arg1[%c1_7, %c0_8, %c0_9] : memref<2x2x2xf32, #tpu.memory_space<vmem>>, vector<1x2x2xf32>
    %14 = vector.shape_cast %13 : vector<1x2x2xf32> to vector<2x2xf32>
    %15 = vector.shape_cast %12 : vector<2x2xf32> to vector<1x2x2xf32>
    tpu.vector_store %arg1[%c1_7, %c0_8, %c0_9], %15 {strides = array<i32>} : memref<2x2x2xf32, #tpu.memory_space<vmem>>, vector<1x2x2xf32>,
    return
  }
}

</mosaic_0001>

<llo_original>
// kernel: tpu_custom_call.1
$region0: #{tpu_custom_call.1}
  #allocation0 [shape = 'u32[]', space=smem, size = 0x4, offset = 0x4, fixed_abs, tag = 'smem constant byte address 0x4 - core index']
  #allocation1 [shape = 'u32[144,128]{1,0:T(1,128)}', space=vmem, size = 0x12000, scoped, tag = 'internal scratch']
  %s0 = inlined_call_operand.hbm [shape: f32[2,2,2], index: 0, kind: input, shape index: {}]
  %s1 = inlined_call_operand.hbm [shape: f32[2,2,2], index: 1, kind: output, shape index: {}]
  %s2 = sld [smem:[#allocation0]]
  $region18: #{tpu_custom_call.1} parent=0
    _
  %s4 = ssub.s32 1, %s2
  %s5 = scalar_select 0, %s4, %s2
  $region1: #{tpu_custom_call.1} parent=0
    #allocation2 [shape = 'u8[2048]{0}', space=vmem, size = 0x800, scoped, tag = 'input window, operand 0, single buffered']
    #allocation3 [shape = 's32[1]{0}', space=sflag, size = 0x4, scoped, tag = 'scoped memory for tpu_custom_call.1']
    #allocation4 [shape = 's32[1]{0}', space=sflag, size = 0x4, scoped, tag = 'scoped memory for tpu_custom_call.1']
    #allocation5 [shape = 'u8[2048]{0}', space=vmem, size = 0x800, scoped, tag = 'output window, operand 0, single buffered']
    %6 = vsyncpa [#allocation3], 0
    %7 = vsyncpa [#allocation4], 0
    // Predicated region
    $region2: #{tpu_custom_call.1} parent=1 // pred_check
      _
    $region3: #{tpu_custom_call.1} parent=1 // pred_check_branch
      %9 = sbr.rel (0) target = $region5
    $region4: #{tpu_custom_call.1} parent=1 // pred_region
      %s11 = ssub.s32 64, 64
      %12 = vsyncadd [#allocation3], %s11
      %s13 = sshll.u32 [#allocation2], 4
      %s14 = int_to_ptr.vmem [resolvable:$true] %s13
      %19 = dma.hbm_to_vmem [thread:$0]  %s0, 64, %s14, [#allocation3], 32, 32, 2
    $region5: #{tpu_custom_call.1} parent=1 // pred_fallthru
      _
    // Predicated region
    $region6: #{tpu_custom_call.1} parent=1 // pred_check
      _
    $region7: #{tpu_custom_call.1} parent=1 // pred_check_branch
      %21 = sbr.rel (0) target = $region9
    $region8: #{tpu_custom_call.1} parent=1 // pred_region
      %22 = dma.done [#allocation3], 64
    $region9: #{tpu_custom_call.1} parent=1 // pred_fallthru
      _
    %v23 = vld [vmem:[#allocation2] sm:$0x3]
    %v24 = vld [vmem:[#allocation2 + $0x2] sm:$0x3]
    %vm25 = vcmask 9216
    %26 = vst.msk [vmem:[#allocation5] sm:$0x3] %vm25, %v23
    %27 = vst.msk [vmem:[#allocation5 + $0x2] sm:$0x3] %vm25, %v24
    %s28 = scalar_lea.vmem [#allocation2], 2
    %v29 = vld [vmem:[%s28] sm:$0x3]
    %v30 = vlaneseq
    %v31 = vshrl.u32 %v30, 7
    %v32 = vlaneseq
    %v33 = vand.u32 %v32, 127
    %vm34 = vcmp.eq.s32.totalorder %v31, 1
    %vm35 = vcmp.eq.s32.totalorder %v33, 0
    %vm36 = vmand %vm34, %vm35
    %v37 = vsel %vm36, 2.0, %v29
    %s38 = scalar_lea.vmem [#allocation5], 2
    %39 = vst.msk [vmem:[%s38] sm:$0x3] %vm25, %v37
    // Predicated region
    $region10: #{tpu_custom_call.1} parent=1 // pred_check
      _
    $region11: #{tpu_custom_call.1} parent=1 // pred_check_branch
      %41 = sbr.rel (0) target = $region13
    $region12: #{tpu_custom_call.1} parent=1 // pred_region
      %s43 = ssub.s32 64, 64
      %44 = vsyncadd [#allocation4], %s43
      %s45 = sshll.u32 [#allocation5], 4
      %s46 = int_to_ptr.vmem [resolvable:$true] %s45
      %51 = dma.vmem_to_hbm [thread:$0]  %s46, 64, %s1, [#allocation4], 32, 32, 2
    $region13: #{tpu_custom_call.1} parent=1 // pred_fallthru
      _
    // Predicated region
    $region14: #{tpu_custom_call.1} parent=1 // pred_check
      _
    $region15: #{tpu_custom_call.1} parent=1 // pred_check_branch
      %53 = sbr.rel (0) target = $region17
    $region16: #{tpu_custom_call.1} parent=1 // pred_region
      %54 = dma.done [#allocation4], 64
    $region17: #{tpu_custom_call.1} parent=1 // pred_fallthru
      _
    %55 = vsyncpa [#allocation3], 1
    %56 = vsyncpa [#allocation4], 1

</llo_original>
